<compile_context>
chip_gen: v7x
topology: tpu7x:2x2x1
jax: 0.10.0
libtpu: 0.0.40
codegen_flags: <defaults>
</compile_context>

<pallas_src>
import functools

import jax
import jax.numpy as jnp
from jax.experimental import pallas as pl
from jax.experimental.pallas import tpu as pltpu


def _conv1d_bn_kernel(x_ref, w_ref, p_ref, o_ref, *, k, bn_before_act, use_relu):
    """One grid step = one (batch, time-tile, C_out-tile) output block.

    x_ref : (1, 1, tT + k - 1, C_in_pad)  overlapping input window (zero halo baked in)
    w_ref : (k, C_in_pad, cout_tile)
    p_ref : (3, cout_tile)                rows: conv bias, BN scale, BN shift (f32)
    o_ref : (1, tT, cout_tile)
    """
    t_out = o_ref.shape[1]

    # conv1d (stride 1, dilation 1, 'same') = k shifted (tT, C_in) @ (C_in, C_out) matmuls.
    # NOTE: sublane starts 1..k-1 are not 8-aligned; if the Mosaic dump shows per-tap
    # relayout copies, fold k into the contraction (single K*C_in-deep matmul) instead.
    acc = jnp.dot(x_ref[0, 0, 0:t_out, :], w_ref[0],
                  preferred_element_type=jnp.float32)
    for dk in range(1, k):                      # k is small & static -> unrolled
        acc += jnp.dot(x_ref[0, 0, dk:dk + t_out, :], w_ref[dk],
                       preferred_element_type=jnp.float32)

    bias = p_ref[0:1, :]
    scale = p_ref[1:2, :]
    shift = p_ref[2:3, :]

    acc = acc + bias
    if bn_before_act:
        acc = acc * scale + shift
        if use_relu:
            acc = jnp.maximum(acc, 0.0)
    else:
        if use_relu:
            acc = jnp.maximum(acc, 0.0)
        acc = acc * scale + shift

    # TODO(synk): dropout is identity in eval mode; training-mode dropout and batch-stat
    #             BatchNorm are not implemented (inference running stats are used).
    o_ref[0, :, :] = acc.astype(o_ref.dtype)


def _round_up(n, m):
    return ((n + m - 1) // m) * m


def conv1d_forward(x, w_torch, bias, gamma, beta, running_mean, running_var, *,
                   kernel_size, eps=1e-5, bn_before_act=False, use_relu=True,
                   time_tile=256, compute_dtype=jnp.bfloat16):
    """x: (B, T, C_in); w_torch: (C_out, C_in, K) PyTorch Conv1d layout. Returns (B, T, C_out)."""
    B, T, C_in = x.shape
    C_out, _, K = w_torch.shape
    assert K == kernel_size
    # 'same' output length requires odd kernel_size with padding (K-1)//2.
    assert kernel_size % 2 == 1, "kernel_size must be odd for 'same' padding"
    pad = (kernel_size - 1) // 2

    # --- tiling & padded sizes (lane-dense channels, 16-aligned time tiles) ---
    c_in_p = _round_up(C_in, 128)
    c_out_p = _round_up(C_out, 128)
    cout_tile = 128                               # (tT, 128) f32 acc stays register-resident
    t_tile = min(_round_up(T, 16), _round_up(time_tile, 16))
    n_t = pl.cdiv(T, t_tile)
    n_co = c_out_p // cout_tile
    t_full = n_t * t_tile
    win = t_tile + 2 * pad
    out_dtype = x.dtype

    # --- input prep (single fused pad + channel-pad + cast + window gather) ---
    # TODO(synk): the overlapping-window HBM copy (~2*pad/tT extra) could be removed with
    #             in-kernel halo DMA (manual make_async_copy); kept wrapper-side for simplicity.
    x_p = jnp.pad(x, ((0, 0), (pad, pad + t_full - T), (0, c_in_p - C_in)))
    x_p = x_p.astype(compute_dtype)
    row_idx = (jnp.arange(n_t)[:, None] * t_tile + jnp.arange(win)[None, :]).reshape(-1)
    x_win = jnp.take(x_p, row_idx, axis=1).reshape(B, n_t, win, c_in_p)

    w_p = jnp.transpose(w_torch, (2, 1, 0))                        # (K, C_in, C_out)
    w_p = jnp.pad(w_p, ((0, 0), (0, c_in_p - C_in), (0, c_out_p - C_out)))
    w_p = w_p.astype(compute_dtype)

    # BatchNorm folded to scale/shift (inference running stats); conv bias kept separate
    # because the activation sits between conv and BN when bn_before_act=False.
    scale = (gamma * jax.lax.rsqrt(running_var + eps)).astype(jnp.float32)
    shift = (beta - running_mean * scale).astype(jnp.float32)
    params = jnp.stack([bias.astype(jnp.float32), scale, shift], axis=0)   # (3, C_out)
    params = jnp.pad(params, ((0, 0), (0, c_out_p - C_out)))

    kernel = functools.partial(_conv1d_bn_kernel, k=K,
                               bn_before_act=bn_before_act, use_relu=use_relu)

    itemsize_in = jnp.dtype(compute_dtype).itemsize
    itemsize_out = jnp.dtype(out_dtype).itemsize
    cost = pl.CostEstimate(
        flops=2 * B * t_full * K * c_in_p * c_out_p,
        transcendentals=0,
        bytes_accessed=(x_win.size * itemsize_in + w_p.size * itemsize_in
                        + params.size * 4 + B * t_full * c_out_p * itemsize_out))

    # Double-buffered per-step VMEM footprint; only raise the scoped limit when needed
    # (keeps headroom on v7x's 64 MiB physical VMEM).
    vmem_needed = 2 * (win * c_in_p * itemsize_in
                       + K * c_in_p * cout_tile * itemsize_in
                       + t_tile * cout_tile * itemsize_out) + 8 * c_out_p * 4
    vmem_limit = None
    if vmem_needed > 30 * 2 ** 20:
        vmem_limit = int(min(vmem_needed * 3 // 2, 64 * 2 ** 20))

    y = pl.pallas_call(
        kernel,
        out_shape=jax.ShapeDtypeStruct((B, t_full, c_out_p), out_dtype),
        grid_spec=pltpu.PrefetchScalarGridSpec(
            num_scalar_prefetch=0,
            grid=(B, n_t, n_co),        # Cout innermost -> x window block not re-fetched
            in_specs=[
                pl.BlockSpec((1, 1, win, c_in_p), lambda b, ti, cj: (b, ti, 0, 0)),
                pl.BlockSpec((K, c_in_p, cout_tile), lambda b, ti, cj: (0, 0, cj)),
                pl.BlockSpec((3, cout_tile), lambda b, ti, cj: (0, cj)),
            ],
            out_specs=pl.BlockSpec((1, t_tile, cout_tile),
                                   lambda b, ti, cj: (b, ti, cj)),
        ),
        compiler_params=pltpu.CompilerParams(
            dimension_semantics=("parallel", "parallel", "parallel"),
            vmem_limit_bytes=vmem_limit),
        cost_estimate=cost,
    )(x_win, w_p, params)

    return y[:, :T, :C_out]


if __name__ == "__main__":
    # Module config: Conv1D(in=16, out=32, kernel_size=3, activation=ReLU, drop_rate>0,
    #                       bn_before_act=False), eval mode.
    B, T = 2, 16
    C_in, C_out, K = 16, 32, 3

    key = jax.random.PRNGKey(0)
    kx, kw = jax.random.split(key)

    # ConvNorm init: xavier_uniform over PyTorch shape (C_out, C_in, K), zero bias.
    fan_in, fan_out = C_in * K, C_out * K
    bound = (6.0 / (fan_in + fan_out)) ** 0.5
    w_torch = jax.random.uniform(kw, (C_out, C_in, K), jnp.float32, -bound, bound)
    bias = jnp.zeros((C_out,), jnp.float32)

    # BatchNorm1d fresh params / running stats (eval mode).
    gamma = jnp.ones((C_out,), jnp.float32)
    beta = jnp.zeros((C_out,), jnp.float32)
    running_mean = jnp.zeros((C_out,), jnp.float32)
    running_var = jnp.ones((C_out,), jnp.float32)

    x = jax.random.normal(kx, (B, T, C_in), jnp.float32)

    y = conv1d_forward(x, w_torch, bias, gamma, beta, running_mean, running_var,
                       kernel_size=K)
    jax.block_until_ready(y)
    assert y.shape == (B, T, C_out)

    # Pure-JAX f32 reference for a sanity check (kernel uses bf16 matmuls -> loose tol).
    x_pad_ref = jnp.pad(x, ((0, 0), (1, 1), (0, 0)))
    w_klc = jnp.transpose(w_torch, (2, 1, 0))                     # (K, C_in, C_out)
    ref = sum(jnp.einsum("btc,cd->btd", x_pad_ref[:, dk:dk + T, :], w_klc[dk])
              for dk in range(K)) + bias
    ref = jnp.maximum(ref, 0.0)
    ref = (ref - running_mean) * jax.lax.rsqrt(running_var + 1e-5) * gamma + beta
    assert jnp.allclose(y, ref, atol=5e-2, rtol=5e-2), float(jnp.max(jnp.abs(y - ref)))

    print("KERNEL_OK")
</pallas_src>

<mosaic_0001>
module attributes {stable_mosaic.version = 11 : i64} {
  func.func @_conv1d_bn_kernel(%arg0: i32, %arg1: i32, %arg2: i32, %arg3: memref<1x1x18x128xbf16, #tpu.memory_space<vmem>>, %arg4: memref<3x128x128xbf16, #tpu.memory_space<vmem>>, %arg5: memref<3x128xf32, #tpu.memory_space<vmem>>, %arg6: memref<1x16x128xf32, #tpu.memory_space<vmem>>) attributes {dimension_semantics = [#tpu.dimension_semantics<parallel>, #tpu.dimension_semantics<parallel>, #tpu.dimension_semantics<parallel>], iteration_bounds = array<i64: 2, 1, 1>, scalar_prefetch = 0 : i64, scratch_operands = 0 : i64, tpu.core_type = #tpu.core_type<tc>, window_params = [{transform_indices = @transform_0, window_bounds = array<i64: 1, 1, 18, 128>}, {transform_indices = @transform_1, window_bounds = array<i64: 3, 128, 128>}, {transform_indices = @transform_2, window_bounds = array<i64: 3, 128>}, {transform_indices = @transform_3, window_bounds = array<i64: 1, 16, 128>}]} {
    %c0 = arith.constant 0 : index
    %c0_0 = arith.constant 0 : index
    %c0_1 = arith.constant 0 : index
    %c0_2 = arith.constant 0 : index
    %0 = vector.load %arg3[%c0, %c0_0, %c0_1, %c0_2] : memref<1x1x18x128xbf16, #tpu.memory_space<vmem>>, vector<1x1x16x128xbf16>
    %1 = vector.shape_cast %0 : vector<1x1x16x128xbf16> to vector<16x128xbf16>
    %c0_3 = arith.constant 0 : index
    %c0_4 = arith.constant 0 : index
    %c0_5 = arith.constant 0 : index
    %2 = vector.load %arg4[%c0_3, %c0_4, %c0_5] : memref<3x128x128xbf16, #tpu.memory_space<vmem>>, vector<1x128x128xbf16>
    %3 = vector.shape_cast %2 : vector<1x128x128xbf16> to vector<128x128xbf16>
    %cst = arith.constant dense<0.000000e+00> : vector<16x128xf32>
    %4 = tpu.matmul %1, %3, %cst {dimension_numbers = #tpu.dot_dimension_numbers<[1], [0], [0], [1], [0, 0, 1, 1], [], []>} : vector<16x128xbf16>, vector<128x128xbf16>, vector<16x128xf32> -> vector<16x128xf32>
    %c0_6 = arith.constant 0 : index
    %c0_7 = arith.constant 0 : index
    %c1 = arith.constant 1 : index
    %c0_8 = arith.constant 0 : index
    %5 = vector.load %arg3[%c0_6, %c0_7, %c1, %c0_8] : memref<1x1x18x128xbf16, #tpu.memory_space<vmem>>, vector<1x1x16x128xbf16>
    %6 = vector.shape_cast %5 : vector<1x1x16x128xbf16> to vector<16x128xbf16>
    %c1_9 = arith.constant 1 : index
    %c0_10 = arith.constant 0 : index
    %c0_11 = arith.constant 0 : index
    %7 = vector.load %arg4[%c1_9, %c0_10, %c0_11] : memref<3x128x128xbf16, #tpu.memory_space<vmem>>, vector<1x128x128xbf16>
    %8 = vector.shape_cast %7 : vector<1x128x128xbf16> to vector<128x128xbf16>
    %cst_12 = arith.constant dense<0.000000e+00> : vector<16x128xf32>
    %9 = tpu.matmul %6, %8, %cst_12 {dimension_numbers = #tpu.dot_dimension_numbers<[1], [0], [0], [1], [0, 0, 1, 1], [], []>} : vector<16x128xbf16>, vector<128x128xbf16>, vector<16x128xf32> -> vector<16x128xf32>
    %10 = arith.addf %4, %9 : vector<16x128xf32>
    %c0_13 = arith.constant 0 : index
    %c0_14 = arith.constant 0 : index
    %c2 = arith.constant 2 : index
    %c0_15 = arith.constant 0 : index
    %11 = vector.load %arg3[%c0_13, %c0_14, %c2, %c0_15] : memref<1x1x18x128xbf16, #tpu.memory_space<vmem>>, vector<1x1x16x128xbf16>
    %12 = vector.shape_cast %11 : vector<1x1x16x128xbf16> to vector<16x128xbf16>
    %c2_16 = arith.constant 2 : index
    %c0_17 = arith.constant 0 : index
    %c0_18 = arith.constant 0 : index
    %13 = vector.load %arg4[%c2_16, %c0_17, %c0_18] : memref<3x128x128xbf16, #tpu.memory_space<vmem>>, vector<1x128x128xbf16>
    %14 = vector.shape_cast %13 : vector<1x128x128xbf16> to vector<128x128xbf16>
    %cst_19 = arith.constant dense<0.000000e+00> : vector<16x128xf32>
    %15 = tpu.matmul %12, %14, %cst_19 {dimension_numbers = #tpu.dot_dimension_numbers<[1], [0], [0], [1], [0, 0, 1, 1], [], []>} : vector<16x128xbf16>, vector<128x128xbf16>, vector<16x128xf32> -> vector<16x128xf32>
    %16 = arith.addf %10, %15 : vector<16x128xf32>
    %c0_20 = arith.constant 0 : index
    %c0_21 = arith.constant 0 : index
    %17 = vector.load %arg5[%c0_20, %c0_21] : memref<3x128xf32, #tpu.memory_space<vmem>>, vector<1x128xf32>
    %c1_22 = arith.constant 1 : index
    %c0_23 = arith.constant 0 : index
    %18 = vector.load %arg5[%c1_22, %c0_23] : memref<3x128xf32, #tpu.memory_space<vmem>>, vector<1x128xf32>
    %c2_24 = arith.constant 2 : index
    %c0_25 = arith.constant 0 : index
    %19 = vector.load %arg5[%c2_24, %c0_25] : memref<3x128xf32, #tpu.memory_space<vmem>>, vector<1x128xf32>
    %20 = vector.broadcast %17 : vector<1x128xf32> to vector<16x128xf32>
    %21 = arith.addf %16, %20 : vector<16x128xf32>
    %cst_26 = arith.constant 0.000000e+00 : f32
    %22 = vector.broadcast %cst_26 : f32 to vector<16x128xf32>
    %23 = arith.maximumf %21, %22 : vector<16x128xf32>
    %24 = vector.broadcast %18 : vector<1x128xf32> to vector<16x128xf32>
    %25 = arith.mulf %23, %24 : vector<16x128xf32>
    %26 = vector.broadcast %19 : vector<1x128xf32> to vector<16x128xf32>
    %27 = arith.addf %25, %26 : vector<16x128xf32>
    %c0_27 = arith.constant 0 : index
    %c0_28 = arith.constant 0 : index
    %c0_29 = arith.constant 0 : index
    %28 = vector.load %arg6[%c0_27, %c0_28, %c0_29] : memref<1x16x128xf32, #tpu.memory_space<vmem>>, vector<1x16x128xf32>
    %29 = vector.shape_cast %28 : vector<1x16x128xf32> to vector<16x128xf32>
    %30 = vector.shape_cast %27 : vector<16x128xf32> to vector<1x16x128xf32>
    tpu.vector_store %arg6[%c0_27, %c0_28, %c0_29], %30 {strides = array<i32>} : memref<1x16x128xf32, #tpu.memory_space<vmem>>, vector<1x16x128xf32>,
    return
  }
  func.func @transform_0(%arg0: i32, %arg1: i32, %arg2: i32) -> (i32, i32, i32, i32) {
    %c0_i32 = arith.constant 0 : i32
    %c0_i32_0 = arith.constant 0 : i32
    %c0_i32_1 = arith.constant 0 : i32
    return %arg0, %arg1, %c0_i32, %c0_i32_0 : i32, i32, i32, i32
  }
  func.func @transform_1(%arg0: i32, %arg1: i32, %arg2: i32) -> (i32, i32, i32) {
    %c0_i32 = arith.constant 0 : i32
    %c0_i32_0 = arith.constant 0 : i32
    %c0_i32_1 = arith.constant 0 : i32
    return %c0_i32, %c0_i32_0, %arg2 : i32, i32, i32
  }
  func.func @transform_2(%arg0: i32, %arg1: i32, %arg2: i32) -> (i32, i32) {
    %c0_i32 = arith.constant 0 : i32
    %c0_i32_0 = arith.constant 0 : i32
    return %c0_i32, %arg2 : i32, i32
  }
  func.func @transform_3(%arg0: i32, %arg1: i32, %arg2: i32) -> (i32, i32, i32) {
    %c0_i32 = arith.constant 0 : i32
    return %arg0, %arg1, %arg2 : i32, i32, i32
  }
}

</mosaic_0001>

<llo_original>
// kernel: tpu_custom_call.1
$region0: #{tpu_custom_call.1}
  #allocation0 [shape = 'u32[]', space=smem, size = 0x4, offset = 0x4, fixed_abs, tag = 'smem constant byte address 0x4 - core index']
  #allocation1 [shape = 'u32[144,128]{1,0:T(1,128)}', space=vmem, size = 0x12000, scoped, tag = 'internal scratch']
  %s0 = inlined_call_operand.vmem [shape: bf16[2,1,18,128], index: 0, kind: input, shape index: {}]
  %s1 = inlined_call_operand.hbm [shape: bf16[3,128,128], index: 1, kind: input, shape index: {}]
  %s2 = inlined_call_operand.vmem [shape: f32[3,128], index: 2, kind: input, shape index: {}]
  %s3 = inlined_call_operand.hbm [shape: f32[2,16,128], index: 3, kind: output, shape index: {}]
  %s4 = sld [smem:[#allocation0]]
  $region49: #{tpu_custom_call.1} parent=0
    _
  %s6 = ssub.s32 1, %s4
  %s7 = scalar_select 0, %s6, %s4
  $region1: #{tpu_custom_call.1} parent=0
    #allocation2 [shape = 'u8[98304]{0}', space=vmem, size = 0x18000, scoped, tag = 'input window, operand 1, single buffered']
    #allocation3 [shape = 's32[2]{0}', space=sflag, size = 0x8, scoped, tag = 'scoped memory for tpu_custom_call.1']
    #allocation4 [shape = 's32[2]{0}', space=sflag, size = 0x8, scoped, tag = 'scoped memory for tpu_custom_call.1']
    #allocation5 [shape = 'u8[16384]{0}', space=vmem, size = 0x4000, scoped, tag = 'output window, operand 0']
    %8 = vsyncpa [#allocation3], 0
    %9 = vsyncpa [#allocation4], 0
    %s10 = scalar_lea.sflag [#allocation4], 1
    %11 = vsyncpa %s10, 0
    loop: start=0, step=1, limit=4
    $region2: #{tpu_custom_call.1} parent=1 // loop_pre_header
      _
    $region3: #{tpu_custom_call.1} parent=1 // loop_header
      %s13 = sphi 0, %s17
      %p14 = scmp.ge.s32.totalorder %s13, 4
      %s20 = sphi 0, %s39
      %s21 = sphi 0, %s35
      %s22 = sphi 0, %s31
      %s23 = sphi 0, %s20
      %s24 = sphi 0, %s21
      %s25 = sphi 0, %s22
      %s26 = sphi 0, %s23
      %s27 = sphi 0, %s24
      %s28 = sphi 0, %s25
      %s44 = sphi 0, %s46
      %s47 = sphi 0, %s44
      %s48 = sphi 0, %s47
      %s64 = sphi 0, %s48
      %s70 = sphi 0, %s72
      %s73 = sphi 0, %s70
      %s74 = sphi 0, %s73
      %s90 = sphi 0, %s74
      %s96 = sphi 0, %s98
      %s99 = sphi 0, %s96
      %s100 = sphi 0, %s99
      %s116 = sphi 0, %s100
      %s126 = sphi 0, %s128
      %s129 = sphi 0, %s126
      %s130 = sphi 0, %s129
      %s146 = sphi 0, %s130
    $region4: #{tpu_custom_call.1} parent=1 // loop_header_branch
      %16 = sbr.rel (%p14) target = $region8
    $region5: #{tpu_custom_call.1} parent=1 // loop_body
      %s18 = ssub.s32 %s13, 1
      %s19 = ssub.s32 %s13, 2
      %s29 = sadd.s32 1, %s22
      %p30 = scmp.ge.s32.totalorder %s29, 1
      %s31 = scalar_select %p30, 0, %s29
      %s32 = sadd.s32 1, %s21
      %s33 = scalar_select %p30, %s32, %s21
      %p34 = scmp.ge.s32.totalorder %s33, 1
      %s35 = scalar_select %p34, 0, %s33
      %s36 = sadd.s32 1, %s20
      %s37 = scalar_select %p34, %s36, %s20
      %p38 = scmp.ge.s32.totalorder %s37, 2
      %s39 = scalar_select %p38, 0, %s37
      %s40 = ssub.s32 %s20, %s39
      %s41 = ssub.s32 %s21, %s35
      %s42 = sor.u32 %s40, %s41
      %p43 = scmp.eq.s32.totalorder %s42, 0
      %s45 = sadd.s32 %s44, 1
      %s46 = scalar_select %p43, %s44, %s45
      %p49 = pneg %p43
      %p50 = scmp.eq.s32.totalorder %s13, 1
      %p51 = por %p49, %p50
      %p52 = scmp.ne.s32.totalorder %s44, %s47
      %p53 = scmp.eq.s32.totalorder %s13, 0
      %p54 = por %p52, %p53
      %p55 = scmp.ne.s32.totalorder %s44, %s47
      %p56 = scmp.eq.s32.totalorder %s18, 1
      %p57 = por %p55, %p56
      %p58 = scmp.ne.s32.totalorder %s47, %s48
      %p59 = scmp.eq.s32.totalorder %s18, 0
      %p60 = por %p58, %p59
      %p61 = scmp.ne.s32.totalorder %s47, %s48
      %p62 = scmp.eq.s32.totalorder %s19, 1
      %p63 = por %p61, %p62
      %p65 = scmp.ne.s32.totalorder %s48, %s64
      %p66 = scmp.eq.s32.totalorder %s19, 0
      %p67 = por %p65, %p66
      %s68 = ssub.s32 %s22, %s31
      %p69 = scmp.eq.s32.totalorder %s68, 0
      %s71 = sadd.s32 %s70, 1
      %s72 = scalar_select %p69, %s70, %s71
      %p75 = pneg %p69
      %p76 = scmp.eq.s32.totalorder %s13, 1
      %p77 = por %p75, %p76
      %p78 = scmp.ne.s32.totalorder %s70, %s73
      %p79 = scmp.eq.s32.totalorder %s13, 0
      %p80 = por %p78, %p79
      %p81 = scmp.ne.s32.totalorder %s70, %s73
      %p82 = scmp.eq.s32.totalorder %s18, 1
      %p83 = por %p81, %p82
      %p84 = scmp.ne.s32.totalorder %s73, %s74
      %p85 = scmp.eq.s32.totalorder %s18, 0
      %p86 = por %p84, %p85
      %p87 = scmp.ne.s32.totalorder %s73, %s74
      %p88 = scmp.eq.s32.totalorder %s19, 1
      %p89 = por %p87, %p88
      %p91 = scmp.ne.s32.totalorder %s74, %s90
      %p92 = scmp.eq.s32.totalorder %s19, 0
      %p93 = por %p91, %p92
      %s94 = ssub.s32 %s22, %s31
      %p95 = scmp.eq.s32.totalorder %s94, 0
      %s97 = sadd.s32 %s96, 1
      %s98 = scalar_select %p95, %s96, %s97
      %p101 = pneg %p95
      %p102 = scmp.eq.s32.totalorder %s13, 1
      %p103 = por %p101, %p102
      %p104 = scmp.ne.s32.totalorder %s96, %s99
      %p105 = scmp.eq.s32.totalorder %s13, 0
      %p106 = por %p104, %p105
      %p107 = scmp.ne.s32.totalorder %s96, %s99
      %p108 = scmp.eq.s32.totalorder %s18, 1
      %p109 = por %p107, %p108
      %p110 = scmp.ne.s32.totalorder %s99, %s100
      %p111 = scmp.eq.s32.totalorder %s18, 0
      %p112 = por %p110, %p111
      %p113 = scmp.ne.s32.totalorder %s99, %s100
      %p114 = scmp.eq.s32.totalorder %s19, 1
      %p115 = por %p113, %p114
      %p117 = scmp.ne.s32.totalorder %s100, %s116
      %p118 = scmp.eq.s32.totalorder %s19, 0
      %p119 = por %p117, %p118
      %s120 = ssub.s32 %s20, %s39
      %s121 = ssub.s32 %s21, %s35
      %s122 = sor.u32 %s120, %s121
      %s123 = ssub.s32 %s22, %s31
      %s124 = sor.u32 %s122, %s123
      %p125 = scmp.eq.s32.totalorder %s124, 0
      %s127 = sadd.s32 %s126, 1
      %s128 = scalar_select %p125, %s126, %s127
      %p131 = pneg %p125
      %p132 = scmp.eq.s32.totalorder %s13, 1
      %p133 = por %p131, %p132
      %p134 = scmp.ne.s32.totalorder %s126, %s129
      %p135 = scmp.eq.s32.totalorder %s13, 0
      %p136 = por %p134, %p135
      %p137 = scmp.ne.s32.totalorder %s126, %s129
      %p138 = scmp.eq.s32.totalorder %s18, 1
      %p139 = por %p137, %p138
      %p140 = scmp.ne.s32.totalorder %s129, %s130
      %p141 = scmp.eq.s32.totalorder %s18, 0
      %p142 = por %p140, %p141
      %p143 = scmp.ne.s32.totalorder %s129, %s130
      %p144 = scmp.eq.s32.totalorder %s19, 1
      %p145 = por %p143, %p144
      %p147 = scmp.ne.s32.totalorder %s130, %s146
      %p148 = scmp.eq.s32.totalorder %s19, 0
      %p149 = por %p147, %p148
      %p150 = scmp.le.s32.totalorder 1, %s13
      %p151 = scmp.lt.s32.totalorder %s13, 3
      %p152 = pnand %p150, %p151
      %p153 = pneg %p152
      // Predicated region
      $region9: #{tpu_custom_call.1} parent=5 // pred_check
        _
      $region10: #{tpu_custom_call.1} parent=5 // pred_check_branch
        %155 = sbr.rel (%p152) target = $region12
      $region11: #{tpu_custom_call.1} parent=5 // pred_region
        %s156 = ssub.s32 %s13, 1
        // Predicated region
        $region13: #{tpu_custom_call.1} parent=11 // pred_check
          %p157 = pneg %p86
        $region14: #{tpu_custom_call.1} parent=11 // pred_check_branch
          %159 = sbr.rel (%p157) target = $region16
        $region15: #{tpu_custom_call.1} parent=11 // pred_region
          %s161 = ssub.s32 3072, 3072
          %162 = vsyncadd [#allocation3], %s161
          %s163 = smul.addr %s25, 64
          %s164 = scalar_lea.hbm %s1, %s163
          %s165 = sshll.u32 [#allocation2], 4
          %s166 = int_to_ptr.vmem [resolvable:$true] %s165
          %171 = dma.hbm_to_vmem [thread:$0]  %s164, 3072, %s166, [#allocation3], 64, 64, 4
        $region16: #{tpu_custom_call.1} parent=11 // pred_fallthru
          _
        // Predicated region
        $region17: #{tpu_custom_call.1} parent=11 // pred_check
          %p172 = pneg %p112
        $region18: #{tpu_custom_call.1} parent=11 // pred_check_branch
          %174 = sbr.rel (%p172) target = $region20
        $region19: #{tpu_custom_call.1} parent=11 // pred_region
          %p175 = scmp.lt.s32.totalorder %s25, 0
          %s176 = scalar_select %p175, %s25, 0
          %s177 = smul.addr %s176, 4
          %s178 = scalar_lea.vmem %s2, %s177
        $region20: #{tpu_custom_call.1} parent=11 // pred_fallthru
          _
      $region12: #{tpu_custom_call.1} parent=5 // pred_fallthru
        _
      %p179 = scmp.lt.s32.totalorder %s13, 2
      // Predicated region
      $region21: #{tpu_custom_call.1} parent=5 // pred_check
        %p180 = pneg %p179
      $region22: #{tpu_custom_call.1} parent=5 // pred_check_branch
        %182 = sbr.rel (%p180) target = $region24
      $region23: #{tpu_custom_call.1} parent=5 // pred_region
        // Predicated region
        $region25: #{tpu_custom_call.1} parent=23 // pred_check
          %p183 = pneg %p54
        $region26: #{tpu_custom_call.1} parent=23 // pred_check_branch
          %185 = sbr.rel (%p183) target = $region28
        $region27: #{tpu_custom_call.1} parent=23 // pred_region
          %p186 = scmp.lt.s32.totalorder %s20, 1
          %s187 = scalar_select %p186, %s20, 1
          %p188 = scmp.lt.s32.totalorder %s21, 0
          %s189 = scalar_select %p188, %s21, 0
          %s190 = smul.addr %s189, 3
          %s191 = smul.addr %s187, 3
          %s192 = sadd.s32 %s190, %s191
          %s193 = smul.addr %s192, 4
          %s194 = scalar_lea.vmem %s0, %s193
        $region28: #{tpu_custom_call.1} parent=23 // pred_fallthru
          _
      $region24: #{tpu_custom_call.1} parent=5 // pred_fallthru
        _
      %p195 = scmp.le.s32.totalorder 1, %s13
      %p196 = scmp.lt.s32.totalorder %s13, 3
      %p197 = pnand %p195, %p196
      %p198 = pneg %p197
      // Predicated region
      $region29: #{tpu_custom_call.1} parent=5 // pred_check
        _
      $region30: #{tpu_custom_call.1} parent=5 // pred_check_branch
        %200 = sbr.rel (%p197) target = $region32
      $region31: #{tpu_custom_call.1} parent=5 // pred_region
        %s201 = ssub.s32 %s13, 1
        // Predicated region
        $region33: #{tpu_custom_call.1} parent=31 // pred_check
          %p202 = pneg %p86
        $region34: #{tpu_custom_call.1} parent=31 // pred_check_branch
          %204 = sbr.rel (%p202) target = $region36
        $region35: #{tpu_custom_call.1} parent=31 // pred_region
          %205 = dma.done [#allocation3], 3072
        $region36: #{tpu_custom_call.1} parent=31 // pred_fallthru
          _
        %p206 = scmp.lt.s32.totalorder %s23, 1
        %s207 = scalar_select %p206, %s23, 1
        %p208 = scmp.lt.s32.totalorder %s24, 0
        %s209 = scalar_select %p208, %s24, 0
        %s210 = smul.addr %s209, 3
        %s211 = smul.addr %s207, 3
        %s212 = sadd.s32 %s210, %s211
        %s213 = smul.addr %s212, 4
        %s214 = scalar_lea.vmem %s0, %s213
        %p215 = pneg %p60
        %p216 = pneg %p57
        %p217 = pneg %p86
        %p218 = pneg %p83
        %p219 = scmp.lt.s32.totalorder %s25, 0
        %s220 = scalar_select %p219, %s25, 0
        %s221 = smul.addr %s220, 4
        %s222 = scalar_lea.vmem %s2, %s221
        %p223 = pneg %p112
        %p224 = pneg %p109
        %p225 = pneg %p142
        %p226 = pneg %p139
        %s227 = sand.u32 %s129, 1
        %s228 = scalar_lea.sflag [#allocation4], %s227
        %s229 = sand.u32 %s129, 1
        %s230 = smul.addr %s229, 16
        %s231 = scalar_lea.vmem [#allocation5], %s230
        %p232 = scmp.lt.s32.totalorder %s23, 1
        %s233 = scalar_select %p232, %s23, 1
        %p234 = scmp.lt.s32.totalorder %s24, 0
        %s235 = scalar_select %p234, %s24, 0
        %s236 = smul.addr %s235, 3
        %s237 = smul.addr %s233, 3
        %s238 = sadd.s32 %s236, %s237
        %s239 = smul.addr %s238, 4
        %s240 = scalar_lea.vmem %s0, %s239
        %p241 = scmp.lt.s32.totalorder %s25, 0
        %s242 = scalar_select %p241, %s25, 0
        %s243 = smul.addr %s242, 4
        %s244 = scalar_lea.vmem %s2, %s243
        %s245 = smul.u32 2, %s24
        %v247 = vld [vmem:[%s240] sm:$0xf]
        %v248 = vld [vmem:[%s240 + $0x4] sm:$0xf]
        %v249 = vld [vmem:[#allocation2] sm:$0xf]
        %v250 = vld [vmem:[#allocation2 + $0x4] sm:$0xf]
        %v251 = vld [vmem:[#allocation2 + $0x8] sm:$0xf]
        %v252 = vld [vmem:[#allocation2 + $0xc] sm:$0xf]
        %v253 = vld [vmem:[#allocation2 + $0x10] sm:$0xf]
        %v254 = vld [vmem:[#allocation2 + $0x14] sm:$0xf]
        %v255 = vld [vmem:[#allocation2 + $0x18] sm:$0xf]
        %v256 = vld [vmem:[#allocation2 + $0x1c] sm:$0xf]
        %v257 = vld [vmem:[#allocation2 + $0x20] sm:$0xf]
        %v258 = vld [vmem:[#allocation2 + $0x24] sm:$0xf]
        %v259 = vld [vmem:[#allocation2 + $0x28] sm:$0xf]
        %v260 = vld [vmem:[#allocation2 + $0x2c] sm:$0xf]
        %v261 = vld [vmem:[#allocation2 + $0x30] sm:$0xf]
        %v262 = vld [vmem:[#allocation2 + $0x34] sm:$0xf]
        %v263 = vld [vmem:[#allocation2 + $0x38] sm:$0xf]
        %v264 = vld [vmem:[#allocation2 + $0x3c] sm:$0xf]
        %v265 = vld [vmem:[%s240 + $0x8] sm:$0x1]
        %s266 = scalar_lea.vmem [#allocation2], 64
        %v267 = vld [vmem:[%s266] sm:$0xf]
        %v268 = vld [vmem:[%s266 + $0x4] sm:$0xf]
        %v269 = vld [vmem:[%s266 + $0x8] sm:$0xf]
        %v270 = vld [vmem:[%s266 + $0xc] sm:$0xf]
        %v271 = vld [vmem:[%s266 + $0x10] sm:$0xf]
        %v272 = vld [vmem:[%s266 + $0x14] sm:$0xf]
        %v273 = vld [vmem:[%s266 + $0x18] sm:$0xf]
        %v274 = vld [vmem:[%s266 + $0x1c] sm:$0xf]
        %v275 = vld [vmem:[%s266 + $0x20] sm:$0xf]
        %v276 = vld [vmem:[%s266 + $0x24] sm:$0xf]
        %v277 = vld [vmem:[%s266 + $0x28] sm:$0xf]
        %v278 = vld [vmem:[%s266 + $0x2c] sm:$0xf]
        %v279 = vld [vmem:[%s266 + $0x30] sm:$0xf]
        %v280 = vld [vmem:[%s266 + $0x34] sm:$0xf]
        %v281 = vld [vmem:[%s266 + $0x38] sm:$0xf]
        %v282 = vld [vmem:[%s266 + $0x3c] sm:$0xf]
        %v286 = vunpack.c.l.b16 %v247
        %v287 = vunpack.c.l.b16 %v248
        %v288 = vunpack.c.l.b16 %v265
        %v289 = vpack.c.b16 %v287, %v286
        %v290 = vpack.c.b16 %v288, %v288
        %vm291 = vsmask.f32 7424
        %v293 = vshrl.u32 %v289, 16
        %v295 = vshll.u32 %v289, 16
        %v297 = vrot.slane %v295, 1
        %v298 = vor.u32 %v293, %v297
        %v300 = vshll.u32 %v290, 16
        %v302 = vrot.slane %v300, 1
        %v303 = vsel %vm291, %v298, %v302
        %v321 = vunpack.c.l.b16 %v267
        %v322 = vunpack.c.l.b16 %v268
        %v323 = vunpack.c.l.b16 %v269
        %v324 = vunpack.c.l.b16 %v270
        %v325 = vunpack.c.l.b16 %v271
        %v326 = vunpack.c.l.b16 %v272
        %v327 = vunpack.c.l.b16 %v273
        %v328 = vunpack.c.l.b16 %v274
        %v329 = vunpack.c.l.b16 %v275
        %v330 = vunpack.c.l.b16 %v276
        %v331 = vunpack.c.l.b16 %v277
        %v332 = vunpack.c.l.b16 %v278
        %v333 = vunpack.c.l.b16 %v279
        %v334 = vunpack.c.l.b16 %v280
        %v335 = vunpack.c.l.b16 %v281
        %v336 = vunpack.c.l.b16 %v282
        %v337 = vpack.c.b16 %v322, %v321
        %v338 = vpack.c.b16 %v324, %v323
        %v339 = vpack.c.b16 %v326, %v325
        %v340 = vpack.c.b16 %v328, %v327
        %v341 = vpack.c.b16 %v330, %v329
        %v342 = vpack.c.b16 %v332, %v331
        %v343 = vpack.c.b16 %v334, %v333
        %v344 = vpack.c.b16 %v336, %v335
        %353 = vmatprep.subr.bf16.mxu0 0
        %354 = vmatpush1.bf16.msra.mxu0 %v337
        %355 = vmatprep.subr.bf16.mxu0 0
        %356 = vmatpush1.bf16.msra.mxu0 %v338
        %357 = vmatprep.subr.bf16.mxu0 0
        %358 = vmatpush1.bf16.msra.mxu0 %v339
        %359 = vmatprep.subr.bf16.mxu0 0
        %360 = vmatpush1.bf16.msra.mxu0 %v340
        %361 = vmatprep.subr.bf16.mxu0 0
        %362 = vmatpush1.bf16.msra.mxu0 %v341
        %363 = vmatprep.subr.bf16.mxu0 0
        %364 = vmatpush1.bf16.msra.mxu0 %v342
        %365 = vmatprep.subr.bf16.mxu0 0
        %366 = vmatpush1.bf16.msra.mxu0 %v343
        %367 = vmatprep.subr.bf16.mxu0 0
        %368 = vmatpush1.bf16.msra.mxu0 %v344
        %369 = vmatprep.subr.bf16.mxu0 0
        %370 = vmatpush1.bf16.msra.mxu0 0
        %371 = vmatprep.subr.bf16.mxu0 0
        %372 = vmatpush1.bf16.msra.mxu0 0
        %373 = vmatprep.subr.bf16.mxu0 0
        %374 = vmatpush1.bf16.msra.mxu0 0
        %375 = vmatprep.subr.bf16.mxu0 0
        %376 = vmatpush1.bf16.msra.mxu0 0
        %377 = vmatprep.subr.bf16.mxu0 0
        %378 = vmatpush1.bf16.msra.mxu0 0
        %379 = vmatprep.subr.bf16.mxu0 0
        %380 = vmatpush1.bf16.msra.mxu0 0
        %381 = vmatprep.subr.bf16.mxu0 0
        %382 = vmatpush1.bf16.msra.mxu0 0
        %383 = vmatprep.subr.bf16.mxu0 0
        %384 = vmatpush1.bf16.msra.mxu0 0
        %385 = vmatprep.mubr.bf16.mxu0 0
        %386 = vmatmul.mubr.bf16.gmra.mrb[0].mxu0 %v303
        %v387 = vpop.f32.mrb[0].mxu0
        %v388 = vadd.f32 0.0, %v387
        %v389 = vpop.f32.mrb[0].mxu0
        %v390 = vpop.f32.mrb[0].mxu0
        %v391 = vadd.f32 0.0, %v390
        %v392 = vpop.f32.mrb[0].mxu0
        %393 = vdwg.mxu0
        %v411 = vunpack.c.l.b16 %v249
        %v412 = vunpack.c.l.b16 %v250
        %v413 = vunpack.c.l.b16 %v251
        %v414 = vunpack.c.l.b16 %v252
        %v415 = vunpack.c.l.b16 %v253
        %v416 = vunpack.c.l.b16 %v254
        %v417 = vunpack.c.l.b16 %v255
        %v418 = vunpack.c.l.b16 %v256
        %v419 = vunpack.c.l.b16 %v257
        %v420 = vunpack.c.l.b16 %v258
        %v421 = vunpack.c.l.b16 %v259
        %v422 = vunpack.c.l.b16 %v260
        %v423 = vunpack.c.l.b16 %v261
        %v424 = vunpack.c.l.b16 %v262
        %v425 = vunpack.c.l.b16 %v263
        %v426 = vunpack.c.l.b16 %v264
        %v427 = vpack.c.b16 %v412, %v411
        %v428 = vpack.c.b16 %v414, %v413
        %v429 = vpack.c.b16 %v416, %v415
        %v430 = vpack.c.b16 %v418, %v417
        %v431 = vpack.c.b16 %v420, %v419
        %v432 = vpack.c.b16 %v422, %v421
        %v433 = vpack.c.b16 %v424, %v423
        %v434 = vpack.c.b16 %v426, %v425
        %443 = vmatprep.subr.bf16.mxu0 0
        %444 = vmatpush1.bf16.msra.mxu0 %v427
        %445 = vmatprep.subr.bf16.mxu0 0
        %446 = vmatpush1.bf16.msra.mxu0 %v428
        %447 = vmatprep.subr.bf16.mxu0 0
        %448 = vmatpush1.bf16.msra.mxu0 %v429
        %449 = vmatprep.subr.bf16.mxu0 0
        %450 = vmatpush1.bf16.msra.mxu0 %v430
        %451 = vmatprep.subr.bf16.mxu0 0
        %452 = vmatpush1.bf16.msra.mxu0 %v431
        %453 = vmatprep.subr.bf16.mxu0 0
        %454 = vmatpush1.bf16.msra.mxu0 %v432
        %455 = vmatprep.subr.bf16.mxu0 0
        %456 = vmatpush1.bf16.msra.mxu0 %v433
        %457 = vmatprep.subr.bf16.mxu0 0
        %458 = vmatpush1.bf16.msra.mxu0 %v434
        %459 = vmatprep.subr.bf16.mxu0 0
        %460 = vmatpush1.bf16.msra.mxu0 0
        %461 = vmatprep.subr.bf16.mxu0 0
        %462 = vmatpush1.bf16.msra.mxu0 0
        %463 = vmatprep.subr.bf16.mxu0 0
        %464 = vmatpush1.bf16.msra.mxu0 0
        %465 = vmatprep.subr.bf16.mxu0 0
        %466 = vmatpush1.bf16.msra.mxu0 0
        %467 = vmatprep.subr.bf16.mxu0 0
        %468 = vmatpush1.bf16.msra.mxu0 0
        %469 = vmatprep.subr.bf16.mxu0 0
        %470 = vmatpush1.bf16.msra.mxu0 0
        %471 = vmatprep.subr.bf16.mxu0 0
        %472 = vmatpush1.bf16.msra.mxu0 0
        %473 = vmatprep.subr.bf16.mxu0 0
        %474 = vmatpush1.bf16.msra.mxu0 0
        %475 = vmatprep.mubr.bf16.mxu0 0
        %476 = vmatmul.mubr.bf16.gmra.mrb[0].mxu0 %v289
        %v477 = vpop.f32.mrb[0].mxu0
        %v478 = vadd.f32 %v388, %v477
        %v479 = vpop.f32.mrb[0].mxu0
        %v480 = vpop.f32.mrb[0].mxu0
        %v481 = vadd.f32 %v391, %v480
        %v482 = vpop.f32.mrb[0].mxu0
        %483 = vdwg.mxu0
        %v484 = vld [vmem:[%s240] sm:$0xe]
        %s485 = scalar_lea.vmem [#allocation2], 128
        %v486 = vld [vmem:[%s485] sm:$0xf]
        %v487 = vld [vmem:[%s485 + $0x4] sm:$0xf]
        %v488 = vld [vmem:[%s485 + $0x8] sm:$0xf]
        %v489 = vld [vmem:[%s485 + $0xc] sm:$0xf]
        %v490 = vld [vmem:[%s485 + $0x10] sm:$0xf]
        %v491 = vld [vmem:[%s485 + $0x14] sm:$0xf]
        %v492 = vld [vmem:[%s485 + $0x18] sm:$0xf]
        %v493 = vld [vmem:[%s485 + $0x1c] sm:$0xf]
        %v494 = vld [vmem:[%s485 + $0x20] sm:$0xf]
        %v495 = vld [vmem:[%s485 + $0x24] sm:$0xf]
        %v496 = vld [vmem:[%s485 + $0x28] sm:$0xf]
        %v497 = vld [vmem:[%s485 + $0x2c] sm:$0xf]
        %v498 = vld [vmem:[%s485 + $0x30] sm:$0xf]
        %v499 = vld [vmem:[%s485 + $0x34] sm:$0xf]
        %v500 = vld [vmem:[%s485 + $0x38] sm:$0xf]
        %v501 = vld [vmem:[%s485 + $0x3c] sm:$0xf]
        %v503 = vunpack.c.l.b16 %v484
        %v504 = vpack.c.b16 %v287, %v503
        %vm505 = vcmask 1046528
        %v506 = vrot.slane %v504, 1
        %v507 = vrot.slane %v290, 1
        %v508 = vsel %vm505, %v506, %v507
        %v526 = vunpack.c.l.b16 %v486
        %v527 = vunpack.c.l.b16 %v487
        %v528 = vunpack.c.l.b16 %v488
        %v529 = vunpack.c.l.b16 %v489
        %v530 = vunpack.c.l.b16 %v490
        %v531 = vunpack.c.l.b16 %v491
        %v532 = vunpack.c.l.b16 %v492
        %v533 = vunpack.c.l.b16 %v493
        %v534 = vunpack.c.l.b16 %v494
        %v535 = vunpack.c.l.b16 %v495
        %v536 = vunpack.c.l.b16 %v496
        %v537 = vunpack.c.l.b16 %v497
        %v538 = vunpack.c.l.b16 %v498
        %v539 = vunpack.c.l.b16 %v499
        %v540 = vunpack.c.l.b16 %v500
        %v541 = vunpack.c.l.b16 %v501
        %v542 = vpack.c.b16 %v527, %v526
        %v543 = vpack.c.b16 %v529, %v528
        %v544 = vpack.c.b16 %v531, %v530
        %v545 = vpack.c.b16 %v533, %v532
        %v546 = vpack.c.b16 %v535, %v534
        %v547 = vpack.c.b16 %v537, %v536
        %v548 = vpack.c.b16 %v539, %v538
        %v549 = vpack.c.b16 %v541, %v540
        %558 = vmatprep.subr.bf16.mxu0 0
        %559 = vmatpush1.bf16.msra.mxu0 %v542
        %560 = vmatprep.subr.bf16.mxu0 0
        %561 = vmatpush1.bf16.msra.mxu0 %v543
        %562 = vmatprep.subr.bf16.mxu0 0
        %563 = vmatpush1.bf16.msra.mxu0 %v544
        %564 = vmatprep.subr.bf16.mxu0 0
        %565 = vmatpush1.bf16.msra.mxu0 %v545
        %566 = vmatprep.subr.bf16.mxu0 0
        %567 = vmatpush1.bf16.msra.mxu0 %v546
        %568 = vmatprep.subr.bf16.mxu0 0
        %569 = vmatpush1.bf16.msra.mxu0 %v547
        %570 = vmatprep.subr.bf16.mxu0 0
        %571 = vmatpush1.bf16.msra.mxu0 %v548
        %572 = vmatprep.subr.bf16.mxu0 0
        %573 = vmatpush1.bf16.msra.mxu0 %v549
        %574 = vmatprep.subr.bf16.mxu0 0
        %575 = vmatpush1.bf16.msra.mxu0 0
        %576 = vmatprep.subr.bf16.mxu0 0
        %577 = vmatpush1.bf16.msra.mxu0 0
        %578 = vmatprep.subr.bf16.mxu0 0
        %579 = vmatpush1.bf16.msra.mxu0 0
        %580 = vmatprep.subr.bf16.mxu0 0
        %581 = vmatpush1.bf16.msra.mxu0 0
        %582 = vmatprep.subr.bf16.mxu0 0
        %583 = vmatpush1.bf16.msra.mxu0 0
        %584 = vmatprep.subr.bf16.mxu0 0
        %585 = vmatpush1.bf16.msra.mxu0 0
        %586 = vmatprep.subr.bf16.mxu0 0
        %587 = vmatpush1.bf16.msra.mxu0 0
        %588 = vmatprep.subr.bf16.mxu0 0
        %589 = vmatpush1.bf16.msra.mxu0 0
        %590 = vmatprep.mubr.bf16.mxu0 0
        %591 = vmatmul.mubr.bf16.gmra.mrb[0].mxu0 %v508
        %v592 = vpop.f32.mrb[0].mxu0
        %v593 = vadd.f32 0.0, %v592
        %v594 = vpop.f32.mrb[0].mxu0
        %v595 = vpop.f32.mrb[0].mxu0
        %v596 = vadd.f32 0.0, %v595
        %v597 = vpop.f32.mrb[0].mxu0
        %598 = vdwg.mxu0
        %v599 = vadd.f32 %v478, %v593
        %v600 = vadd.f32 %v481, %v596
        %v601 = vld [vmem:[%s244] sm:$0x1]
        %v602 = vld [vmem:[%s244 + $0x1] sm:$0x1]
        %v603 = vld [vmem:[%s244 + $0x2] sm:$0x1]
        %v604 = vlaneseq
        %v605 = vshrl.u32 %v604, 7
        %v606 = vsub.s32 0, %v605
        %v607 = vrot.slane %v601, %v606
        %v608 = vadd.f32 %v599, %v607
        %v609 = vadd.f32 %v600, %v607
        %v610 = vmax.f32 %v608, 0.0
        %v611 = vmax.f32 %v609, 0.0
        %v612 = vlaneseq
        %v613 = vshrl.u32 %v612, 7
        %v614 = vsub.s32 0, %v613
        %v615 = vrot.slane %v602, %v614
        %v616 = vmul.f32 %v610, %v615
        %v617 = vmul.f32 %v611, %v615
        %v618 = vlaneseq
        %v619 = vshrl.u32 %v618, 7
        %v620 = vsub.s32 0, %v619
        %v621 = vrot.slane %v603, %v620
        %v622 = vadd.f32 %v616, %v621
        %v623 = vadd.f32 %v617, %v621
        %624 = vst [vmem:[%s231] sm:$0xff] %v622
        %625 = vst [vmem:[%s231 + $0x8] sm:$0xff] %v623
        %s626 = sand.u32 %s129, 1
        %s627 = scalar_lea.sflag [#allocation4], %s626
        %s628 = sand.u32 %s129, 1
        %s629 = smul.addr %s628, 16
        %s630 = scalar_lea.vmem [#allocation5], %s629
        // Predicated region
        $region37: #{tpu_custom_call.1} parent=31 // pred_check
          %p631 = pneg %p139
        $region38: #{tpu_custom_call.1} parent=31 // pred_check_branch
          %633 = sbr.rel (%p631) target = $region40
        $region39: #{tpu_custom_call.1} parent=31 // pred_region
          %s634 = smul.u32 2, %s24
          %s636 = ssub.s32 256, 256
          %637 = vsyncadd %s627, %s636
          %s638 = sadd.s32 %s25, %s634
          %s639 = smul.addr %s23, 2
          %s640 = sadd.s32 %s638, %s639
          %s641 = smul.addr %s640, 128
          %s642 = scalar_lea.hbm %s3, %s641
          %s643 = sshll.u32 %s630, 4
          %s644 = int_to_ptr.vmem [resolvable:$true] %s643
          %649 = dma.vmem_to_hbm [thread:$0]  %s644, 256, %s642, %s627, 128, 128, 8
        $region40: #{tpu_custom_call.1} parent=31 // pred_fallthru
          _
      $region32: #{tpu_custom_call.1} parent=5 // pred_fallthru
        _
      %p650 = scmp.le.s32.totalorder 2, %s13
      // Predicated region
      $region41: #{tpu_custom_call.1} parent=5 // pred_check
        %p651 = pneg %p650
      $region42: #{tpu_custom_call.1} parent=5 // pred_check_branch
        %653 = sbr.rel (%p651) target = $region44
      $region43: #{tpu_custom_call.1} parent=5 // pred_region
        %s654 = ssub.s32 %s13, 2
        // Predicated region
        $region45: #{tpu_custom_call.1} parent=43 // pred_check
          %p655 = pneg %p145
        $region46: #{tpu_custom_call.1} parent=43 // pred_check_branch
          %657 = sbr.rel (%p655) target = $region48
        $region47: #{tpu_custom_call.1} parent=43 // pred_region
          %s658 = sand.u32 %s130, 1
          %s659 = scalar_lea.sflag [#allocation4], %s658
          %s660 = sand.u32 %s130, 1
          %s661 = smul.addr %s660, 16
          %s662 = scalar_lea.vmem [#allocation5], %s661
          %663 = dma.done %s659, 256
        $region48: #{tpu_custom_call.1} parent=43 // pred_fallthru
          _
      $region44: #{tpu_custom_call.1} parent=5 // pred_fallthru
        _
    $region6: #{tpu_custom_call.1} parent=1 // loop_footer
      %s17 = sadd.s32 1, %s13
    $region7: #{tpu_custom_call.1} parent=1 // loop_footer_branch
      %12 = sbr.rel target = $region3
    $region8: #{tpu_custom_call.1} parent=1 // loop_exit
      _
    %664 = vsyncpa [#allocation3], 1
    %s665 = scalar_lea.sflag [#allocation3], 1
    %666 = vsyncpa %s665, 1
    %667 = vsyncpa [#allocation4], 1
    %s668 = scalar_lea.sflag [#allocation4], 1
    %669 = vsyncpa %s668, 1

</llo_original>
